<compile_context>
chip_gen: v5e
topology: v5e:2x2
jax: 0.10.0
libtpu: 0.0.40
codegen_flags: <defaults>
</compile_context>

<pallas_src>
from functools import partial

import jax
import jax.numpy as jnp
from jax.experimental import pallas as pl
from jax.experimental.pallas import tpu as pltpu  # noqa: F401  (kept for TPU backend symbols)


def _bcast_mul_kernel(scale_ref, x_ref, o_ref):
    # scale_ref: (C, 1)   x_ref / o_ref: (C, HW)
    # Per-channel scale broadcast across the lane (HW) axis — single VPU multiply.
    o_ref[...] = x_ref[...] * scale_ref[...]


@partial(jax.jit, donate_argnums=(1,))
def channelwise_mul(x364, x359):
    """x364: (N, C, 1, 1), x359: (N, C, H, W) -> (N, C, H, W)."""
    n, c, h, w = x359.shape
    assert x364.shape == (n, c, 1, 1)
    hw = h * w
    cc = n * c

    # Native NCHW-derived layout: channels on sublanes, spatial on lanes.
    # Both reshapes are contiguous (free) — no transposes anywhere.
    x2d = x359.reshape(cc, hw)   # (C, HW)
    s2d = x364.reshape(cc, 1)    # (C, 1)

    out2d = pl.pallas_call(
        _bcast_mul_kernel,
        out_shape=jax.ShapeDtypeStruct((cc, hw), x359.dtype),
        grid=(1,),
        in_specs=[
            pl.BlockSpec((cc, 1), lambda i: (0, 0)),    # scale (full extent)
            pl.BlockSpec((cc, hw), lambda i: (0, 0)),   # activation (full extent)
        ],
        out_specs=pl.BlockSpec((cc, hw), lambda i: (0, 0)),
        input_output_aliases={1: 0},  # multiply in place (x359 buffer, donated)
    )(s2d, x2d)

    return out2d.reshape(n, c, h, w)


if __name__ == "__main__":
    key = jax.random.PRNGKey(0)
    k1, k2 = jax.random.split(key)

    # Shapes taken directly from the module (~273 KB total).
    x359 = jax.random.normal(k1, (1, 1392, 7, 7), dtype=jnp.float32)
    x364 = jax.random.normal(k2, (1, 1392, 1, 1), dtype=jnp.float32)

    # Reference BEFORE the kernel call (x359's buffer is donated / reused in place).
    ref = jax.block_until_ready(x364 * x359)

    out = channelwise_mul(x364, x359)
    out = jax.block_until_ready(out)

    # Elementwise f32 multiply -> results are exact.
    assert out.shape == ref.shape
    assert jnp.allclose(out, ref, atol=0, rtol=0), "mismatch vs reference"

    print("KERNEL_OK")
</pallas_src>

<mosaic_0001>
module attributes {stable_mosaic.version = 11 : i64} {
  func.func @_bcast_mul_kernel(%arg0: i32, %arg1: memref<1392x1xf32, #tpu.memory_space<vmem>>, %arg2: memref<1392x49xf32, #tpu.memory_space<vmem>>, %arg3: memref<1392x49xf32, #tpu.memory_space<vmem>>) attributes {dimension_semantics = [#tpu.dimension_semantics<arbitrary>], iteration_bounds = array<i64: 1>, scalar_prefetch = 0 : i64, scratch_operands = 0 : i64, tpu.core_type = #tpu.core_type<tc>, window_params = [{pipeline_mode = #tpu.pipeline_mode<synchronous>, transform_indices = @transform_0, window_bounds = array<i64: 1392, 1>}, {pipeline_mode = #tpu.pipeline_mode<synchronous>, transform_indices = @transform_1, window_bounds = array<i64: 1392, 49>}, {pipeline_mode = #tpu.pipeline_mode<synchronous>, transform_indices = @transform_2, window_bounds = array<i64: 1392, 49>}]} {
    %c0 = arith.constant 0 : index
    %c0_0 = arith.constant 0 : index
    %0 = vector.load %arg2[%c0, %c0_0] : memref<1392x49xf32, #tpu.memory_space<vmem>>, vector<1392x49xf32>
    %c0_1 = arith.constant 0 : index
    %c0_2 = arith.constant 0 : index
    %1 = vector.load %arg1[%c0_1, %c0_2] : memref<1392x1xf32, #tpu.memory_space<vmem>>, vector<1392x1xf32>
    %2 = vector.broadcast %1 : vector<1392x1xf32> to vector<1392x49xf32>
    %3 = arith.mulf %0, %2 : vector<1392x49xf32>
    %c0_3 = arith.constant 0 : index
    %c0_4 = arith.constant 0 : index
    %4 = vector.load %arg3[%c0_3, %c0_4] : memref<1392x49xf32, #tpu.memory_space<vmem>>, vector<1392x49xf32>
    tpu.vector_store %arg3[%c0_3, %c0_4], %3 {strides = array<i32>} : memref<1392x49xf32, #tpu.memory_space<vmem>>, vector<1392x49xf32>,
    return
  }
  func.func @transform_0(%arg0: i32) -> (i32, i32) {
    %c0_i32 = arith.constant 0 : i32
    %c0_i32_0 = arith.constant 0 : i32
    %c0_i32_1 = arith.constant 0 : i32
    return %c0_i32, %c0_i32_0 : i32, i32
  }
  func.func @transform_1(%arg0: i32) -> (i32, i32) {
    %c0_i32 = arith.constant 0 : i32
    %c0_i32_0 = arith.constant 0 : i32
    %c0_i32_1 = arith.constant 0 : i32
    return %c0_i32, %c0_i32_0 : i32, i32
  }
  func.func @transform_2(%arg0: i32) -> (i32, i32) {
    %c0_i32 = arith.constant 0 : i32
    %c0_i32_0 = arith.constant 0 : i32
    %c0_i32_1 = arith.constant 0 : i32
    return %c0_i32, %c0_i32_0 : i32, i32
  }
}

</mosaic_0001>

<llo_original>
// kernel: channelwise_mul.1
$region0: #{channelwise_mul.1}
  #allocation0 [shape = 'u32[]', space=smem, size = 0x4, offset = 0x4, fixed_abs, tag = 'smem constant byte address 0x4 - core index']
  #allocation1 [shape = 'u32[72,128]{1,0:T(1,128)}', space=vmem, size = 0x9000, scoped, tag = 'internal scratch']
  %s0 = inlined_call_operand.vmem [shape: f32[1392,1], index: 0, kind: input, shape index: {}]
  %s1 = inlined_call_operand.vmem [shape: f32[1392,49], index: 1, kind: input, shape index: {}, may-alias: {1,2}]
  %s2 = inlined_call_operand.vmem [shape: f32[1392,49], index: 2, kind: output, shape index: {}, may-alias: {1,2}]
  %s3 = sld [smem:[#allocation0]]
  $region18: #{channelwise_mul.1} parent=0
    _
  %s5 = ssub.s32 1, %s3
  %s6 = scalar_select 0, %s5, %s3
  // Predicated region
  $region2: #{channelwise_mul.1} parent=0 // pred_check
    _
  $region3: #{channelwise_mul.1} parent=0 // pred_check_branch
    %8 = sbr.rel (0) target = $region5
  $region4: #{channelwise_mul.1} parent=0 // pred_region
    _
  $region5: #{channelwise_mul.1} parent=0 // pred_fallthru
    _
  // Predicated region
  $region6: #{channelwise_mul.1} parent=0 // pred_check
    _
  $region7: #{channelwise_mul.1} parent=0 // pred_check_branch
    %10 = sbr.rel (0) target = $region9
  $region8: #{channelwise_mul.1} parent=0 // pred_region
    _
  $region9: #{channelwise_mul.1} parent=0 // pred_fallthru
    _
  %v11 = vld [vmem:[%s1] sm:$0xff]
  %v12 = vld [vmem:[%s1 + $0x8] sm:$0xff]
  %v13 = vld [vmem:[%s1 + $0x10] sm:$0xff]
  %v14 = vld [vmem:[%s1 + $0x18] sm:$0xff]
  %v15 = vld [vmem:[%s1 + $0x20] sm:$0xff]
  %v16 = vld [vmem:[%s1 + $0x28] sm:$0xff]
  %v17 = vld [vmem:[%s1 + $0x30] sm:$0xff]
  %v18 = vld [vmem:[%s1 + $0x38] sm:$0xff]
  %v19 = vld [vmem:[%s1 + $0x40] sm:$0xff]
  %v20 = vld [vmem:[%s1 + $0x48] sm:$0xff]
  %v21 = vld [vmem:[%s1 + $0x50] sm:$0xff]
  %v22 = vld [vmem:[%s1 + $0x58] sm:$0xff]
  %v23 = vld [vmem:[%s1 + $0x60] sm:$0xff]
  %v24 = vld [vmem:[%s1 + $0x68] sm:$0xff]
  %v25 = vld [vmem:[%s1 + $0x70] sm:$0xff]
  %v26 = vld [vmem:[%s1 + $0x78] sm:$0xff]
  %v27 = vld [vmem:[%s1 + $0x80] sm:$0xff]
  %v28 = vld [vmem:[%s1 + $0x88] sm:$0xff]
  %v29 = vld [vmem:[%s1 + $0x90] sm:$0xff]
  %v30 = vld [vmem:[%s1 + $0x98] sm:$0xff]
  %v31 = vld [vmem:[%s1 + $0xa0] sm:$0xff]
  %v32 = vld [vmem:[%s1 + $0xa8] sm:$0xff]
  %v33 = vld [vmem:[%s1 + $0xb0] sm:$0xff]
  %v34 = vld [vmem:[%s1 + $0xb8] sm:$0xff]
  %v35 = vld [vmem:[%s1 + $0xc0] sm:$0xff]
  %v36 = vld [vmem:[%s1 + $0xc8] sm:$0xff]
  %v37 = vld [vmem:[%s1 + $0xd0] sm:$0xff]
  %v38 = vld [vmem:[%s1 + $0xd8] sm:$0xff]
  %v39 = vld [vmem:[%s1 + $0xe0] sm:$0xff]
  %v40 = vld [vmem:[%s1 + $0xe8] sm:$0xff]
  %v41 = vld [vmem:[%s1 + $0xf0] sm:$0xff]
  %v42 = vld [vmem:[%s1 + $0xf8] sm:$0xff]
  %v43 = vld [vmem:[%s1 + $0x100] sm:$0xff]
  %v44 = vld [vmem:[%s1 + $0x108] sm:$0xff]
  %v45 = vld [vmem:[%s1 + $0x110] sm:$0xff]
  %v46 = vld [vmem:[%s1 + $0x118] sm:$0xff]
  %v47 = vld [vmem:[%s1 + $0x120] sm:$0xff]
  %v48 = vld [vmem:[%s1 + $0x128] sm:$0xff]
  %v49 = vld [vmem:[%s1 + $0x130] sm:$0xff]
  %v50 = vld [vmem:[%s1 + $0x138] sm:$0xff]
  %v51 = vld [vmem:[%s1 + $0x140] sm:$0xff]
  %v52 = vld [vmem:[%s1 + $0x148] sm:$0xff]
  %v53 = vld [vmem:[%s1 + $0x150] sm:$0xff]
  %v54 = vld [vmem:[%s1 + $0x158] sm:$0xff]
  %v55 = vld [vmem:[%s1 + $0x160] sm:$0xff]
  %v56 = vld [vmem:[%s1 + $0x168] sm:$0xff]
  %v57 = vld [vmem:[%s1 + $0x170] sm:$0xff]
  %v58 = vld [vmem:[%s1 + $0x178] sm:$0xff]
  %v59 = vld [vmem:[%s1 + $0x180] sm:$0xff]
  %v60 = vld [vmem:[%s1 + $0x188] sm:$0xff]
  %v61 = vld [vmem:[%s1 + $0x190] sm:$0xff]
  %v62 = vld [vmem:[%s1 + $0x198] sm:$0xff]
  %v63 = vld [vmem:[%s1 + $0x1a0] sm:$0xff]
  %v64 = vld [vmem:[%s1 + $0x1a8] sm:$0xff]
  %v65 = vld [vmem:[%s1 + $0x1b0] sm:$0xff]
  %v66 = vld [vmem:[%s1 + $0x1b8] sm:$0xff]
  %v67 = vld [vmem:[%s1 + $0x1c0] sm:$0xff]
  %v68 = vld [vmem:[%s1 + $0x1c8] sm:$0xff]
  %v69 = vld [vmem:[%s1 + $0x1d0] sm:$0xff]
  %v70 = vld [vmem:[%s1 + $0x1d8] sm:$0xff]
  %v71 = vld [vmem:[%s1 + $0x1e0] sm:$0xff]
  %v72 = vld [vmem:[%s1 + $0x1e8] sm:$0xff]
  %v73 = vld [vmem:[%s1 + $0x1f0] sm:$0xff]
  %v74 = vld [vmem:[%s1 + $0x1f8] sm:$0xff]
  %v75 = vld [vmem:[%s1 + $0x200] sm:$0xff]
  %v76 = vld [vmem:[%s1 + $0x208] sm:$0xff]
  %v77 = vld [vmem:[%s1 + $0x210] sm:$0xff]
  %v78 = vld [vmem:[%s1 + $0x218] sm:$0xff]
  %v79 = vld [vmem:[%s1 + $0x220] sm:$0xff]
  %v80 = vld [vmem:[%s1 + $0x228] sm:$0xff]
  %v81 = vld [vmem:[%s1 + $0x230] sm:$0xff]
  %v82 = vld [vmem:[%s1 + $0x238] sm:$0xff]
  %v83 = vld [vmem:[%s1 + $0x240] sm:$0xff]
  %v84 = vld [vmem:[%s1 + $0x248] sm:$0xff]
  %v85 = vld [vmem:[%s1 + $0x250] sm:$0xff]
  %v86 = vld [vmem:[%s1 + $0x258] sm:$0xff]
  %v87 = vld [vmem:[%s1 + $0x260] sm:$0xff]
  %v88 = vld [vmem:[%s1 + $0x268] sm:$0xff]
  %v89 = vld [vmem:[%s1 + $0x270] sm:$0xff]
  %v90 = vld [vmem:[%s1 + $0x278] sm:$0xff]
  %v91 = vld [vmem:[%s1 + $0x280] sm:$0xff]
  %v92 = vld [vmem:[%s1 + $0x288] sm:$0xff]
  %v93 = vld [vmem:[%s1 + $0x290] sm:$0xff]
  %v94 = vld [vmem:[%s1 + $0x298] sm:$0xff]
  %v95 = vld [vmem:[%s1 + $0x2a0] sm:$0xff]
  %v96 = vld [vmem:[%s1 + $0x2a8] sm:$0xff]
  %v97 = vld [vmem:[%s1 + $0x2b0] sm:$0xff]
  %v98 = vld [vmem:[%s1 + $0x2b8] sm:$0xff]
  %v99 = vld [vmem:[%s1 + $0x2c0] sm:$0xff]
  %v100 = vld [vmem:[%s1 + $0x2c8] sm:$0xff]
  %v101 = vld [vmem:[%s1 + $0x2d0] sm:$0xff]
  %v102 = vld [vmem:[%s1 + $0x2d8] sm:$0xff]
  %v103 = vld [vmem:[%s1 + $0x2e0] sm:$0xff]
  %v104 = vld [vmem:[%s1 + $0x2e8] sm:$0xff]
  %v105 = vld [vmem:[%s1 + $0x2f0] sm:$0xff]
  %v106 = vld [vmem:[%s1 + $0x2f8] sm:$0xff]
  %v107 = vld [vmem:[%s1 + $0x300] sm:$0xff]
  %v108 = vld [vmem:[%s1 + $0x308] sm:$0xff]
  %v109 = vld [vmem:[%s1 + $0x310] sm:$0xff]
  %v110 = vld [vmem:[%s1 + $0x318] sm:$0xff]
  %v111 = vld [vmem:[%s1 + $0x320] sm:$0xff]
  %v112 = vld [vmem:[%s1 + $0x328] sm:$0xff]
  %v113 = vld [vmem:[%s1 + $0x330] sm:$0xff]
  %v114 = vld [vmem:[%s1 + $0x338] sm:$0xff]
  %v115 = vld [vmem:[%s1 + $0x340] sm:$0xff]
  %v116 = vld [vmem:[%s1 + $0x348] sm:$0xff]
  %v117 = vld [vmem:[%s1 + $0x350] sm:$0xff]
  %v118 = vld [vmem:[%s1 + $0x358] sm:$0xff]
  %v119 = vld [vmem:[%s1 + $0x360] sm:$0xff]
  %v120 = vld [vmem:[%s1 + $0x368] sm:$0xff]
  %v121 = vld [vmem:[%s1 + $0x370] sm:$0xff]
  %v122 = vld [vmem:[%s1 + $0x378] sm:$0xff]
  %v123 = vld [vmem:[%s1 + $0x380] sm:$0xff]
  %v124 = vld [vmem:[%s1 + $0x388] sm:$0xff]
  %v125 = vld [vmem:[%s1 + $0x390] sm:$0xff]
  %v126 = vld [vmem:[%s1 + $0x398] sm:$0xff]
  %v127 = vld [vmem:[%s1 + $0x3a0] sm:$0xff]
  %v128 = vld [vmem:[%s1 + $0x3a8] sm:$0xff]
  %v129 = vld [vmem:[%s1 + $0x3b0] sm:$0xff]
  %v130 = vld [vmem:[%s1 + $0x3b8] sm:$0xff]
  %v131 = vld [vmem:[%s1 + $0x3c0] sm:$0xff]
  %v132 = vld [vmem:[%s1 + $0x3c8] sm:$0xff]
  %v133 = vld [vmem:[%s1 + $0x3d0] sm:$0xff]
  %v134 = vld [vmem:[%s1 + $0x3d8] sm:$0xff]
  %v135 = vld [vmem:[%s1 + $0x3e0] sm:$0xff]
  %v136 = vld [vmem:[%s1 + $0x3e8] sm:$0xff]
  %v137 = vld [vmem:[%s1 + $0x3f0] sm:$0xff]
  %v138 = vld [vmem:[%s1 + $0x3f8] sm:$0xff]
  %v139 = vld [vmem:[%s1 + $0x400] sm:$0xff]
  %v140 = vld [vmem:[%s1 + $0x408] sm:$0xff]
  %v141 = vld [vmem:[%s1 + $0x410] sm:$0xff]
  %v142 = vld [vmem:[%s1 + $0x418] sm:$0xff]
  %v143 = vld [vmem:[%s1 + $0x420] sm:$0xff]
  %v144 = vld [vmem:[%s1 + $0x428] sm:$0xff]
  %v145 = vld [vmem:[%s1 + $0x430] sm:$0xff]
  %v146 = vld [vmem:[%s1 + $0x438] sm:$0xff]
  %v147 = vld [vmem:[%s1 + $0x440] sm:$0xff]
  %v148 = vld [vmem:[%s1 + $0x448] sm:$0xff]
  %v149 = vld [vmem:[%s1 + $0x450] sm:$0xff]
  %v150 = vld [vmem:[%s1 + $0x458] sm:$0xff]
  %v151 = vld [vmem:[%s1 + $0x460] sm:$0xff]
  %v152 = vld [vmem:[%s1 + $0x468] sm:$0xff]
  %v153 = vld [vmem:[%s1 + $0x470] sm:$0xff]
  %v154 = vld [vmem:[%s1 + $0x478] sm:$0xff]
  %v155 = vld [vmem:[%s1 + $0x480] sm:$0xff]
  %v156 = vld [vmem:[%s1 + $0x488] sm:$0xff]
  %v157 = vld [vmem:[%s1 + $0x490] sm:$0xff]
  %v158 = vld [vmem:[%s1 + $0x498] sm:$0xff]
  %v159 = vld [vmem:[%s1 + $0x4a0] sm:$0xff]
  %v160 = vld [vmem:[%s1 + $0x4a8] sm:$0xff]
  %v161 = vld [vmem:[%s1 + $0x4b0] sm:$0xff]
  %v162 = vld [vmem:[%s1 + $0x4b8] sm:$0xff]
  %v163 = vld [vmem:[%s1 + $0x4c0] sm:$0xff]
  %v164 = vld [vmem:[%s1 + $0x4c8] sm:$0xff]
  %v165 = vld [vmem:[%s1 + $0x4d0] sm:$0xff]
  %v166 = vld [vmem:[%s1 + $0x4d8] sm:$0xff]
  %v167 = vld [vmem:[%s1 + $0x4e0] sm:$0xff]
  %v168 = vld [vmem:[%s1 + $0x4e8] sm:$0xff]
  %v169 = vld [vmem:[%s1 + $0x4f0] sm:$0xff]
  %v170 = vld [vmem:[%s1 + $0x4f8] sm:$0xff]
  %v171 = vld [vmem:[%s1 + $0x500] sm:$0xff]
  %v172 = vld [vmem:[%s1 + $0x508] sm:$0xff]
  %v173 = vld [vmem:[%s1 + $0x510] sm:$0xff]
  %v174 = vld [vmem:[%s1 + $0x518] sm:$0xff]
  %v175 = vld [vmem:[%s1 + $0x520] sm:$0xff]
  %v176 = vld [vmem:[%s1 + $0x528] sm:$0xff]
  %v177 = vld [vmem:[%s1 + $0x530] sm:$0xff]
  %v178 = vld [vmem:[%s1 + $0x538] sm:$0xff]
  %v179 = vld [vmem:[%s1 + $0x540] sm:$0xff]
  %v180 = vld [vmem:[%s1 + $0x548] sm:$0xff]
  %v181 = vld [vmem:[%s1 + $0x550] sm:$0xff]
  %v182 = vld [vmem:[%s1 + $0x558] sm:$0xff]
  %v183 = vld [vmem:[%s1 + $0x560] sm:$0xff]
  %v184 = vld [vmem:[%s1 + $0x568] sm:$0xff]
  %v185 = vld [vmem:[%s0] sm:$0xff]
  %v186 = vld [vmem:[%s0 + $0x8] sm:$0xff]
  %v187 = vld [vmem:[%s0 + $0x10] sm:$0xff]
  %v188 = vld [vmem:[%s0 + $0x18] sm:$0xff]
  %v189 = vld [vmem:[%s0 + $0x20] sm:$0xff]
  %v190 = vld [vmem:[%s0 + $0x28] sm:$0xff]
  %v191 = vld [vmem:[%s0 + $0x30] sm:$0xff]
  %v192 = vld [vmem:[%s0 + $0x38] sm:$0xff]
  %v193 = vld [vmem:[%s0 + $0x40] sm:$0xff]
  %v194 = vld [vmem:[%s0 + $0x48] sm:$0xff]
  %v195 = vld [vmem:[%s0 + $0x50] sm:$0xff]
  %v196 = vld [vmem:[%s0 + $0x58] sm:$0xff]
  %v197 = vld [vmem:[%s0 + $0x60] sm:$0xff]
  %v198 = vld [vmem:[%s0 + $0x68] sm:$0xff]
  %v199 = vld [vmem:[%s0 + $0x70] sm:$0xff]
  %v200 = vld [vmem:[%s0 + $0x78] sm:$0xff]
  %v201 = vld [vmem:[%s0 + $0x80] sm:$0xff]
  %v202 = vld [vmem:[%s0 + $0x88] sm:$0xff]
  %v203 = vld [vmem:[%s0 + $0x90] sm:$0xff]
  %v204 = vld [vmem:[%s0 + $0x98] sm:$0xff]
  %v205 = vld [vmem:[%s0 + $0xa0] sm:$0xff]
  %v206 = vld [vmem:[%s0 + $0xa8] sm:$0xff]
  %v207 = vld [vmem:[%s0 + $0xb0] sm:$0xff]
  %v208 = vld [vmem:[%s0 + $0xb8] sm:$0xff]
  %v209 = vld [vmem:[%s0 + $0xc0] sm:$0xff]
  %v210 = vld [vmem:[%s0 + $0xc8] sm:$0xff]
  %v211 = vld [vmem:[%s0 + $0xd0] sm:$0xff]
  %v212 = vld [vmem:[%s0 + $0xd8] sm:$0xff]
  %v213 = vld [vmem:[%s0 + $0xe0] sm:$0xff]
  %v214 = vld [vmem:[%s0 + $0xe8] sm:$0xff]
  %v215 = vld [vmem:[%s0 + $0xf0] sm:$0xff]
  %v216 = vld [vmem:[%s0 + $0xf8] sm:$0xff]
  %v217 = vld [vmem:[%s0 + $0x100] sm:$0xff]
  %v218 = vld [vmem:[%s0 + $0x108] sm:$0xff]
  %v219 = vld [vmem:[%s0 + $0x110] sm:$0xff]
  %v220 = vld [vmem:[%s0 + $0x118] sm:$0xff]
  %v221 = vld [vmem:[%s0 + $0x120] sm:$0xff]
  %v222 = vld [vmem:[%s0 + $0x128] sm:$0xff]
  %v223 = vld [vmem:[%s0 + $0x130] sm:$0xff]
  %v224 = vld [vmem:[%s0 + $0x138] sm:$0xff]
  %v225 = vld [vmem:[%s0 + $0x140] sm:$0xff]
  %v226 = vld [vmem:[%s0 + $0x148] sm:$0xff]
  %v227 = vld [vmem:[%s0 + $0x150] sm:$0xff]
  %v228 = vld [vmem:[%s0 + $0x158] sm:$0xff]
  %v229 = vld [vmem:[%s0 + $0x160] sm:$0xff]
  %v230 = vld [vmem:[%s0 + $0x168] sm:$0xff]
  %v231 = vld [vmem:[%s0 + $0x170] sm:$0xff]
  %v232 = vld [vmem:[%s0 + $0x178] sm:$0xff]
  %v233 = vld [vmem:[%s0 + $0x180] sm:$0xff]
  %v234 = vld [vmem:[%s0 + $0x188] sm:$0xff]
  %v235 = vld [vmem:[%s0 + $0x190] sm:$0xff]
  %v236 = vld [vmem:[%s0 + $0x198] sm:$0xff]
  %v237 = vld [vmem:[%s0 + $0x1a0] sm:$0xff]
  %v238 = vld [vmem:[%s0 + $0x1a8] sm:$0xff]
  %v239 = vld [vmem:[%s0 + $0x1b0] sm:$0xff]
  %v240 = vld [vmem:[%s0 + $0x1b8] sm:$0xff]
  %v241 = vld [vmem:[%s0 + $0x1c0] sm:$0xff]
  %v242 = vld [vmem:[%s0 + $0x1c8] sm:$0xff]
  %v243 = vld [vmem:[%s0 + $0x1d0] sm:$0xff]
  %v244 = vld [vmem:[%s0 + $0x1d8] sm:$0xff]
  %v245 = vld [vmem:[%s0 + $0x1e0] sm:$0xff]
  %v246 = vld [vmem:[%s0 + $0x1e8] sm:$0xff]
  %v247 = vld [vmem:[%s0 + $0x1f0] sm:$0xff]
  %v248 = vld [vmem:[%s0 + $0x1f8] sm:$0xff]
  %v249 = vld [vmem:[%s0 + $0x200] sm:$0xff]
  %v250 = vld [vmem:[%s0 + $0x208] sm:$0xff]
  %v251 = vld [vmem:[%s0 + $0x210] sm:$0xff]
  %v252 = vld [vmem:[%s0 + $0x218] sm:$0xff]
  %v253 = vld [vmem:[%s0 + $0x220] sm:$0xff]
  %v254 = vld [vmem:[%s0 + $0x228] sm:$0xff]
  %v255 = vld [vmem:[%s0 + $0x230] sm:$0xff]
  %v256 = vld [vmem:[%s0 + $0x238] sm:$0xff]
  %v257 = vld [vmem:[%s0 + $0x240] sm:$0xff]
  %v258 = vld [vmem:[%s0 + $0x248] sm:$0xff]
  %v259 = vld [vmem:[%s0 + $0x250] sm:$0xff]
  %v260 = vld [vmem:[%s0 + $0x258] sm:$0xff]
  %v261 = vld [vmem:[%s0 + $0x260] sm:$0xff]
  %v262 = vld [vmem:[%s0 + $0x268] sm:$0xff]
  %v263 = vld [vmem:[%s0 + $0x270] sm:$0xff]
  %v264 = vld [vmem:[%s0 + $0x278] sm:$0xff]
  %v265 = vld [vmem:[%s0 + $0x280] sm:$0xff]
  %v266 = vld [vmem:[%s0 + $0x288] sm:$0xff]
  %v267 = vld [vmem:[%s0 + $0x290] sm:$0xff]
  %v268 = vld [vmem:[%s0 + $0x298] sm:$0xff]
  %v269 = vld [vmem:[%s0 + $0x2a0] sm:$0xff]
  %v270 = vld [vmem:[%s0 + $0x2a8] sm:$0xff]
  %v271 = vld [vmem:[%s0 + $0x2b0] sm:$0xff]
  %v272 = vld [vmem:[%s0 + $0x2b8] sm:$0xff]
  %v273 = vld [vmem:[%s0 + $0x2c0] sm:$0xff]
  %v274 = vld [vmem:[%s0 + $0x2c8] sm:$0xff]
  %v275 = vld [vmem:[%s0 + $0x2d0] sm:$0xff]
  %v276 = vld [vmem:[%s0 + $0x2d8] sm:$0xff]
  %v277 = vld [vmem:[%s0 + $0x2e0] sm:$0xff]
  %v278 = vld [vmem:[%s0 + $0x2e8] sm:$0xff]
  %v279 = vld [vmem:[%s0 + $0x2f0] sm:$0xff]
  %v280 = vld [vmem:[%s0 + $0x2f8] sm:$0xff]
  %v281 = vld [vmem:[%s0 + $0x300] sm:$0xff]
  %v282 = vld [vmem:[%s0 + $0x308] sm:$0xff]
  %v283 = vld [vmem:[%s0 + $0x310] sm:$0xff]
  %v284 = vld [vmem:[%s0 + $0x318] sm:$0xff]
  %v285 = vld [vmem:[%s0 + $0x320] sm:$0xff]
  %v286 = vld [vmem:[%s0 + $0x328] sm:$0xff]
  %v287 = vld [vmem:[%s0 + $0x330] sm:$0xff]
  %v288 = vld [vmem:[%s0 + $0x338] sm:$0xff]
  %v289 = vld [vmem:[%s0 + $0x340] sm:$0xff]
  %v290 = vld [vmem:[%s0 + $0x348] sm:$0xff]
  %v291 = vld [vmem:[%s0 + $0x350] sm:$0xff]
  %v292 = vld [vmem:[%s0 + $0x358] sm:$0xff]
  %v293 = vld [vmem:[%s0 + $0x360] sm:$0xff]
  %v294 = vld [vmem:[%s0 + $0x368] sm:$0xff]
  %v295 = vld [vmem:[%s0 + $0x370] sm:$0xff]
  %v296 = vld [vmem:[%s0 + $0x378] sm:$0xff]
  %v297 = vld [vmem:[%s0 + $0x380] sm:$0xff]
  %v298 = vld [vmem:[%s0 + $0x388] sm:$0xff]
  %v299 = vld [vmem:[%s0 + $0x390] sm:$0xff]
  %v300 = vld [vmem:[%s0 + $0x398] sm:$0xff]
  %v301 = vld [vmem:[%s0 + $0x3a0] sm:$0xff]
  %v302 = vld [vmem:[%s0 + $0x3a8] sm:$0xff]
  %v303 = vld [vmem:[%s0 + $0x3b0] sm:$0xff]
  %v304 = vld [vmem:[%s0 + $0x3b8] sm:$0xff]
  %v305 = vld [vmem:[%s0 + $0x3c0] sm:$0xff]
  %v306 = vld [vmem:[%s0 + $0x3c8] sm:$0xff]
  %v307 = vld [vmem:[%s0 + $0x3d0] sm:$0xff]
  %v308 = vld [vmem:[%s0 + $0x3d8] sm:$0xff]
  %v309 = vld [vmem:[%s0 + $0x3e0] sm:$0xff]
  %v310 = vld [vmem:[%s0 + $0x3e8] sm:$0xff]
  %v311 = vld [vmem:[%s0 + $0x3f0] sm:$0xff]
  %v312 = vld [vmem:[%s0 + $0x3f8] sm:$0xff]
  %v313 = vld [vmem:[%s0 + $0x400] sm:$0xff]
  %v314 = vld [vmem:[%s0 + $0x408] sm:$0xff]
  %v315 = vld [vmem:[%s0 + $0x410] sm:$0xff]
  %v316 = vld [vmem:[%s0 + $0x418] sm:$0xff]
  %v317 = vld [vmem:[%s0 + $0x420] sm:$0xff]
  %v318 = vld [vmem:[%s0 + $0x428] sm:$0xff]
  %v319 = vld [vmem:[%s0 + $0x430] sm:$0xff]
  %v320 = vld [vmem:[%s0 + $0x438] sm:$0xff]
  %v321 = vld [vmem:[%s0 + $0x440] sm:$0xff]
  %v322 = vld [vmem:[%s0 + $0x448] sm:$0xff]
  %v323 = vld [vmem:[%s0 + $0x450] sm:$0xff]
  %v324 = vld [vmem:[%s0 + $0x458] sm:$0xff]
  %v325 = vld [vmem:[%s0 + $0x460] sm:$0xff]
  %v326 = vld [vmem:[%s0 + $0x468] sm:$0xff]
  %v327 = vld [vmem:[%s0 + $0x470] sm:$0xff]
  %v328 = vld [vmem:[%s0 + $0x478] sm:$0xff]
  %v329 = vld [vmem:[%s0 + $0x480] sm:$0xff]
  %v330 = vld [vmem:[%s0 + $0x488] sm:$0xff]
  %v331 = vld [vmem:[%s0 + $0x490] sm:$0xff]
  %v332 = vld [vmem:[%s0 + $0x498] sm:$0xff]
  %v333 = vld [vmem:[%s0 + $0x4a0] sm:$0xff]
  %v334 = vld [vmem:[%s0 + $0x4a8] sm:$0xff]
  %v335 = vld [vmem:[%s0 + $0x4b0] sm:$0xff]
  %v336 = vld [vmem:[%s0 + $0x4b8] sm:$0xff]
  %v337 = vld [vmem:[%s0 + $0x4c0] sm:$0xff]
  %v338 = vld [vmem:[%s0 + $0x4c8] sm:$0xff]
  %v339 = vld [vmem:[%s0 + $0x4d0] sm:$0xff]
  %v340 = vld [vmem:[%s0 + $0x4d8] sm:$0xff]
  %v341 = vld [vmem:[%s0 + $0x4e0] sm:$0xff]
  %v342 = vld [vmem:[%s0 + $0x4e8] sm:$0xff]
  %v343 = vld [vmem:[%s0 + $0x4f0] sm:$0xff]
  %v344 = vld [vmem:[%s0 + $0x4f8] sm:$0xff]
  %v345 = vld [vmem:[%s0 + $0x500] sm:$0xff]
  %v346 = vld [vmem:[%s0 + $0x508] sm:$0xff]
  %v347 = vld [vmem:[%s0 + $0x510] sm:$0xff]
  %v348 = vld [vmem:[%s0 + $0x518] sm:$0xff]
  %v349 = vld [vmem:[%s0 + $0x520] sm:$0xff]
  %v350 = vld [vmem:[%s0 + $0x528] sm:$0xff]
  %v351 = vld [vmem:[%s0 + $0x530] sm:$0xff]
  %v352 = vld [vmem:[%s0 + $0x538] sm:$0xff]
  %v353 = vld [vmem:[%s0 + $0x540] sm:$0xff]
  %v354 = vld [vmem:[%s0 + $0x548] sm:$0xff]
  %v355 = vld [vmem:[%s0 + $0x550] sm:$0xff]
  %v356 = vld [vmem:[%s0 + $0x558] sm:$0xff]
  %v357 = vld [vmem:[%s0 + $0x560] sm:$0xff]
  %v358 = vld [vmem:[%s0 + $0x568] sm:$0xff]
  %360 = vset.pattern.permute.xlu0 0
  %361 = vperm.xlu0 %360, %v185
  %v362 = vpop.permute.xlu0 %361
  %365 = vset.pattern.permute.xlu0 0
  %366 = vperm.xlu0 %365, %v186
  %v367 = vpop.permute.xlu0 %366
  %370 = vset.pattern.permute.xlu0 0
  %371 = vperm.xlu0 %370, %v187
  %v372 = vpop.permute.xlu0 %371
  %375 = vset.pattern.permute.xlu0 0
  %376 = vperm.xlu0 %375, %v188
  %v377 = vpop.permute.xlu0 %376
  %380 = vset.pattern.permute.xlu0 0
  %381 = vperm.xlu0 %380, %v189
  %v382 = vpop.permute.xlu0 %381
  %385 = vset.pattern.permute.xlu0 0
  %386 = vperm.xlu0 %385, %v190
  %v387 = vpop.permute.xlu0 %386
  %390 = vset.pattern.permute.xlu0 0
  %391 = vperm.xlu0 %390, %v191
  %v392 = vpop.permute.xlu0 %391
  %395 = vset.pattern.permute.xlu0 0
  %396 = vperm.xlu0 %395, %v192
  %v397 = vpop.permute.xlu0 %396
  %400 = vset.pattern.permute.xlu0 0
  %401 = vperm.xlu0 %400, %v193
  %v402 = vpop.permute.xlu0 %401
  %405 = vset.pattern.permute.xlu0 0
  %406 = vperm.xlu0 %405, %v194
  %v407 = vpop.permute.xlu0 %406
  %410 = vset.pattern.permute.xlu0 0
  %411 = vperm.xlu0 %410, %v195
  %v412 = vpop.permute.xlu0 %411
  %415 = vset.pattern.permute.xlu0 0
  %416 = vperm.xlu0 %415, %v196
  %v417 = vpop.permute.xlu0 %416
  %420 = vset.pattern.permute.xlu0 0
  %421 = vperm.xlu0 %420, %v197
  %v422 = vpop.permute.xlu0 %421
  %425 = vset.pattern.permute.xlu0 0
  %426 = vperm.xlu0 %425, %v198
  %v427 = vpop.permute.xlu0 %426
  %430 = vset.pattern.permute.xlu0 0
  %431 = vperm.xlu0 %430, %v199
  %v432 = vpop.permute.xlu0 %431
  %435 = vset.pattern.permute.xlu0 0
  %436 = vperm.xlu0 %435, %v200
  %v437 = vpop.permute.xlu0 %436
  %440 = vset.pattern.permute.xlu0 0
  %441 = vperm.xlu0 %440, %v201
  %v442 = vpop.permute.xlu0 %441
  %445 = vset.pattern.permute.xlu0 0
  %446 = vperm.xlu0 %445, %v202
  %v447 = vpop.permute.xlu0 %446
  %450 = vset.pattern.permute.xlu0 0
  %451 = vperm.xlu0 %450, %v203
  %v452 = vpop.permute.xlu0 %451
  %455 = vset.pattern.permute.xlu0 0
  %456 = vperm.xlu0 %455, %v204
  %v457 = vpop.permute.xlu0 %456
  %460 = vset.pattern.permute.xlu0 0
  %461 = vperm.xlu0 %460, %v205
  %v462 = vpop.permute.xlu0 %461
  %465 = vset.pattern.permute.xlu0 0
  %466 = vperm.xlu0 %465, %v206
  %v467 = vpop.permute.xlu0 %466
  %470 = vset.pattern.permute.xlu0 0
  %471 = vperm.xlu0 %470, %v207
  %v472 = vpop.permute.xlu0 %471
  %475 = vset.pattern.permute.xlu0 0
  %476 = vperm.xlu0 %475, %v208
  %v477 = vpop.permute.xlu0 %476
  %480 = vset.pattern.permute.xlu0 0
  %481 = vperm.xlu0 %480, %v209
  %v482 = vpop.permute.xlu0 %481
  %485 = vset.pattern.permute.xlu0 0
  %486 = vperm.xlu0 %485, %v210
  %v487 = vpop.permute.xlu0 %486
  %490 = vset.pattern.permute.xlu0 0
  %491 = vperm.xlu0 %490, %v211
  %v492 = vpop.permute.xlu0 %491
  %495 = vset.pattern.permute.xlu0 0
  %496 = vperm.xlu0 %495, %v212
  %v497 = vpop.permute.xlu0 %496
  %500 = vset.pattern.permute.xlu0 0
  %501 = vperm.xlu0 %500, %v213
  %v502 = vpop.permute.xlu0 %501
  %505 = vset.pattern.permute.xlu0 0
  %506 = vperm.xlu0 %505, %v214
  %v507 = vpop.permute.xlu0 %506
  %510 = vset.pattern.permute.xlu0 0
  %511 = vperm.xlu0 %510, %v215
  %v512 = vpop.permute.xlu0 %511
  %515 = vset.pattern.permute.xlu0 0
  %516 = vperm.xlu0 %515, %v216
  %v517 = vpop.permute.xlu0 %516
  %520 = vset.pattern.permute.xlu0 0
  %521 = vperm.xlu0 %520, %v217
  %v522 = vpop.permute.xlu0 %521
  %525 = vset.pattern.permute.xlu0 0
  %526 = vperm.xlu0 %525, %v218
  %v527 = vpop.permute.xlu0 %526
  %530 = vset.pattern.permute.xlu0 0
  %531 = vperm.xlu0 %530, %v219
  %v532 = vpop.permute.xlu0 %531
  %535 = vset.pattern.permute.xlu0 0
  %536 = vperm.xlu0 %535, %v220
  %v537 = vpop.permute.xlu0 %536
  %540 = vset.pattern.permute.xlu0 0
  %541 = vperm.xlu0 %540, %v221
  %v542 = vpop.permute.xlu0 %541
  %545 = vset.pattern.permute.xlu0 0
  %546 = vperm.xlu0 %545, %v222
  %v547 = vpop.permute.xlu0 %546
  %550 = vset.pattern.permute.xlu0 0
  %551 = vperm.xlu0 %550, %v223
  %v552 = vpop.permute.xlu0 %551
  %555 = vset.pattern.permute.xlu0 0
  %556 = vperm.xlu0 %555, %v224
  %v557 = vpop.permute.xlu0 %556
  %560 = vset.pattern.permute.xlu0 0
  %561 = vperm.xlu0 %560, %v225
  %v562 = vpop.permute.xlu0 %561
  %565 = vset.pattern.permute.xlu0 0
  %566 = vperm.xlu0 %565, %v226
  %v567 = vpop.permute.xlu0 %566
  %570 = vset.pattern.permute.xlu0 0
  %571 = vperm.xlu0 %570, %v227
  %v572 = vpop.permute.xlu0 %571
  %575 = vset.pattern.permute.xlu0 0
  %576 = vperm.xlu0 %575, %v228
  %v577 = vpop.permute.xlu0 %576
  %580 = vset.pattern.permute.xlu0 0
  %581 = vperm.xlu0 %580, %v229
  %v582 = vpop.permute.xlu0 %581
  %585 = vset.pattern.permute.xlu0 0
  %586 = vperm.xlu0 %585, %v230
  %v587 = vpop.permute.xlu0 %586
  %590 = vset.pattern.permute.xlu0 0
  %591 = vperm.xlu0 %590, %v231
  %v592 = vpop.permute.xlu0 %591
  %595 = vset.pattern.permute.xlu0 0
  %596 = vperm.xlu0 %595, %v232
  %v597 = vpop.permute.xlu0 %596
  %600 = vset.pattern.permute.xlu0 0
  %601 = vperm.xlu0 %600, %v233
  %v602 = vpop.permute.xlu0 %601
  %605 = vset.pattern.permute.xlu0 0
  %606 = vperm.xlu0 %605, %v234
  %v607 = vpop.permute.xlu0 %606
  %610 = vset.pattern.permute.xlu0 0
  %611 = vperm.xlu0 %610, %v235
  %v612 = vpop.permute.xlu0 %611
  %615 = vset.pattern.permute.xlu0 0
  %616 = vperm.xlu0 %615, %v236
  %v617 = vpop.permute.xlu0 %616
  %620 = vset.pattern.permute.xlu0 0
  %621 = vperm.xlu0 %620, %v237
  %v622 = vpop.permute.xlu0 %621
  %625 = vset.pattern.permute.xlu0 0
  %626 = vperm.xlu0 %625, %v238
  %v627 = vpop.permute.xlu0 %626
  %630 = vset.pattern.permute.xlu0 0
  %631 = vperm.xlu0 %630, %v239
  %v632 = vpop.permute.xlu0 %631
  %635 = vset.pattern.permute.xlu0 0
  %636 = vperm.xlu0 %635, %v240
  %v637 = vpop.permute.xlu0 %636
  %640 = vset.pattern.permute.xlu0 0
  %641 = vperm.xlu0 %640, %v241
  %v642 = vpop.permute.xlu0 %641
  %645 = vset.pattern.permute.xlu0 0
  %646 = vperm.xlu0 %645, %v242
  %v647 = vpop.permute.xlu0 %646
  %650 = vset.pattern.permute.xlu0 0
  %651 = vperm.xlu0 %650, %v243
  %v652 = vpop.permute.xlu0 %651
  %655 = vset.pattern.permute.xlu0 0
  %656 = vperm.xlu0 %655, %v244
  %v657 = vpop.permute.xlu0 %656
  %660 = vset.pattern.permute.xlu0 0
  %661 = vperm.xlu0 %660, %v245
  %v662 = vpop.permute.xlu0 %661
  %665 = vset.pattern.permute.xlu0 0
  %666 = vperm.xlu0 %665, %v246
  %v667 = vpop.permute.xlu0 %666
  %670 = vset.pattern.permute.xlu0 0
  %671 = vperm.xlu0 %670, %v247
  %v672 = vpop.permute.xlu0 %671
  %675 = vset.pattern.permute.xlu0 0
  %676 = vperm.xlu0 %675, %v248
  %v677 = vpop.permute.xlu0 %676
  %680 = vset.pattern.permute.xlu0 0
  %681 = vperm.xlu0 %680, %v249
  %v682 = vpop.permute.xlu0 %681
  %685 = vset.pattern.permute.xlu0 0
  %686 = vperm.xlu0 %685, %v250
  %v687 = vpop.permute.xlu0 %686
  %690 = vset.pattern.permute.xlu0 0
  %691 = vperm.xlu0 %690, %v251
  %v692 = vpop.permute.xlu0 %691
  %695 = vset.pattern.permute.xlu0 0
  %696 = vperm.xlu0 %695, %v252
  %v697 = vpop.permute.xlu0 %696
  %700 = vset.pattern.permute.xlu0 0
  %701 = vperm.xlu0 %700, %v253
  %v702 = vpop.permute.xlu0 %701
  %705 = vset.pattern.permute.xlu0 0
  %706 = vperm.xlu0 %705, %v254
  %v707 = vpop.permute.xlu0 %706
  %710 = vset.pattern.permute.xlu0 0
  %711 = vperm.xlu0 %710, %v255
  %v712 = vpop.permute.xlu0 %711
  %715 = vset.pattern.permute.xlu0 0
  %716 = vperm.xlu0 %715, %v256
  %v717 = vpop.permute.xlu0 %716
  %720 = vset.pattern.permute.xlu0 0
  %721 = vperm.xlu0 %720, %v257
  %v722 = vpop.permute.xlu0 %721
  %725 = vset.pattern.permute.xlu0 0
  %726 = vperm.xlu0 %725, %v258
  %v727 = vpop.permute.xlu0 %726
  %730 = vset.pattern.permute.xlu0 0
  %731 = vperm.xlu0 %730, %v259
  %v732 = vpop.permute.xlu0 %731
  %735 = vset.pattern.permute.xlu0 0
  %736 = vperm.xlu0 %735, %v260
  %v737 = vpop.permute.xlu0 %736
  %740 = vset.pattern.permute.xlu0 0
  %741 = vperm.xlu0 %740, %v261
  %v742 = vpop.permute.xlu0 %741
  %745 = vset.pattern.permute.xlu0 0
  %746 = vperm.xlu0 %745, %v262
  %v747 = vpop.permute.xlu0 %746
  %750 = vset.pattern.permute.xlu0 0
  %751 = vperm.xlu0 %750, %v263
  %v752 = vpop.permute.xlu0 %751
  %755 = vset.pattern.permute.xlu0 0
  %756 = vperm.xlu0 %755, %v264
  %v757 = vpop.permute.xlu0 %756
  %760 = vset.pattern.permute.xlu0 0
  %761 = vperm.xlu0 %760, %v265
  %v762 = vpop.permute.xlu0 %761
  %765 = vset.pattern.permute.xlu0 0
  %766 = vperm.xlu0 %765, %v266
  %v767 = vpop.permute.xlu0 %766
  %770 = vset.pattern.permute.xlu0 0
  %771 = vperm.xlu0 %770, %v267
  %v772 = vpop.permute.xlu0 %771
  %775 = vset.pattern.permute.xlu0 0
  %776 = vperm.xlu0 %775, %v268
  %v777 = vpop.permute.xlu0 %776
  %780 = vset.pattern.permute.xlu0 0
  %781 = vperm.xlu0 %780, %v269
  %v782 = vpop.permute.xlu0 %781
  %785 = vset.pattern.permute.xlu0 0
  %786 = vperm.xlu0 %785, %v270
  %v787 = vpop.permute.xlu0 %786
  %790 = vset.pattern.permute.xlu0 0
  %791 = vperm.xlu0 %790, %v271
  %v792 = vpop.permute.xlu0 %791
  %795 = vset.pattern.permute.xlu0 0
  %796 = vperm.xlu0 %795, %v272
  %v797 = vpop.permute.xlu0 %796
  %800 = vset.pattern.permute.xlu0 0
  %801 = vperm.xlu0 %800, %v273
  %v802 = vpop.permute.xlu0 %801
  %805 = vset.pattern.permute.xlu0 0
  %806 = vperm.xlu0 %805, %v274
  %v807 = vpop.permute.xlu0 %806
  %810 = vset.pattern.permute.xlu0 0
  %811 = vperm.xlu0 %810, %v275
  %v812 = vpop.permute.xlu0 %811
  %815 = vset.pattern.permute.xlu0 0
  %816 = vperm.xlu0 %815, %v276
  %v817 = vpop.permute.xlu0 %816
  %820 = vset.pattern.permute.xlu0 0
  %821 = vperm.xlu0 %820, %v277
  %v822 = vpop.permute.xlu0 %821
  %825 = vset.pattern.permute.xlu0 0
  %826 = vperm.xlu0 %825, %v278
  %v827 = vpop.permute.xlu0 %826
  %830 = vset.pattern.permute.xlu0 0
  %831 = vperm.xlu0 %830, %v279
  %v832 = vpop.permute.xlu0 %831
  %835 = vset.pattern.permute.xlu0 0
  %836 = vperm.xlu0 %835, %v280
  %v837 = vpop.permute.xlu0 %836
  %840 = vset.pattern.permute.xlu0 0
  %841 = vperm.xlu0 %840, %v281
  %v842 = vpop.permute.xlu0 %841
  %845 = vset.pattern.permute.xlu0 0
  %846 = vperm.xlu0 %845, %v282
  %v847 = vpop.permute.xlu0 %846
  %850 = vset.pattern.permute.xlu0 0
  %851 = vperm.xlu0 %850, %v283
  %v852 = vpop.permute.xlu0 %851
  %855 = vset.pattern.permute.xlu0 0
  %856 = vperm.xlu0 %855, %v284
  %v857 = vpop.permute.xlu0 %856
  %860 = vset.pattern.permute.xlu0 0
  %861 = vperm.xlu0 %860, %v285
  %v862 = vpop.permute.xlu0 %861
  %865 = vset.pattern.permute.xlu0 0
  %866 = vperm.xlu0 %865, %v286
  %v867 = vpop.permute.xlu0 %866
  %870 = vset.pattern.permute.xlu0 0
  %871 = vperm.xlu0 %870, %v287
  %v872 = vpop.permute.xlu0 %871
  %875 = vset.pattern.permute.xlu0 0
  %876 = vperm.xlu0 %875, %v288
  %v877 = vpop.permute.xlu0 %876
  %880 = vset.pattern.permute.xlu0 0
  %881 = vperm.xlu0 %880, %v289
  %v882 = vpop.permute.xlu0 %881
  %885 = vset.pattern.permute.xlu0 0
  %886 = vperm.xlu0 %885, %v290
  %v887 = vpop.permute.xlu0 %886
  %890 = vset.pattern.permute.xlu0 0
  %891 = vperm.xlu0 %890, %v291
  %v892 = vpop.permute.xlu0 %891
  %895 = vset.pattern.permute.xlu0 0
  %896 = vperm.xlu0 %895, %v292
  %v897 = vpop.permute.xlu0 %896
  %900 = vset.pattern.permute.xlu0 0
  %901 = vperm.xlu0 %900, %v293
  %v902 = vpop.permute.xlu0 %901
  %905 = vset.pattern.permute.xlu0 0
  %906 = vperm.xlu0 %905, %v294
  %v907 = vpop.permute.xlu0 %906
  %910 = vset.pattern.permute.xlu0 0
  %911 = vperm.xlu0 %910, %v295
  %v912 = vpop.permute.xlu0 %911
  %915 = vset.pattern.permute.xlu0 0
  %916 = vperm.xlu0 %915, %v296
  %v917 = vpop.permute.xlu0 %916
  %920 = vset.pattern.permute.xlu0 0
  %921 = vperm.xlu0 %920, %v297
  %v922 = vpop.permute.xlu0 %921
  %925 = vset.pattern.permute.xlu0 0
  %926 = vperm.xlu0 %925, %v298
  %v927 = vpop.permute.xlu0 %926
  %930 = vset.pattern.permute.xlu0 0
  %931 = vperm.xlu0 %930, %v299
  %v932 = vpop.permute.xlu0 %931
  %935 = vset.pattern.permute.xlu0 0
  %936 = vperm.xlu0 %935, %v300
  %v937 = vpop.permute.xlu0 %936
  %940 = vset.pattern.permute.xlu0 0
  %941 = vperm.xlu0 %940, %v301
  %v942 = vpop.permute.xlu0 %941
  %945 = vset.pattern.permute.xlu0 0
  %946 = vperm.xlu0 %945, %v302
  %v947 = vpop.permute.xlu0 %946
  %950 = vset.pattern.permute.xlu0 0
  %951 = vperm.xlu0 %950, %v303
  %v952 = vpop.permute.xlu0 %951
  %955 = vset.pattern.permute.xlu0 0
  %956 = vperm.xlu0 %955, %v304
  %v957 = vpop.permute.xlu0 %956
  %960 = vset.pattern.permute.xlu0 0
  %961 = vperm.xlu0 %960, %v305
  %v962 = vpop.permute.xlu0 %961
  %965 = vset.pattern.permute.xlu0 0
  %966 = vperm.xlu0 %965, %v306
  %v967 = vpop.permute.xlu0 %966
  %970 = vset.pattern.permute.xlu0 0
  %971 = vperm.xlu0 %970, %v307
  %v972 = vpop.permute.xlu0 %971
  %975 = vset.pattern.permute.xlu0 0
  %976 = vperm.xlu0 %975, %v308
  %v977 = vpop.permute.xlu0 %976
  %980 = vset.pattern.permute.xlu0 0
  %981 = vperm.xlu0 %980, %v309
  %v982 = vpop.permute.xlu0 %981
  %985 = vset.pattern.permute.xlu0 0
  %986 = vperm.xlu0 %985, %v310
  %v987 = vpop.permute.xlu0 %986
  %990 = vset.pattern.permute.xlu0 0
  %991 = vperm.xlu0 %990, %v311
  %v992 = vpop.permute.xlu0 %991
  %995 = vset.pattern.permute.xlu0 0
  %996 = vperm.xlu0 %995, %v312
  %v997 = vpop.permute.xlu0 %996
  %1000 = vset.pattern.permute.xlu0 0
  %1001 = vperm.xlu0 %1000, %v313
  %v1002 = vpop.permute.xlu0 %1001
  %1005 = vset.pattern.permute.xlu0 0
  %1006 = vperm.xlu0 %1005, %v314
  %v1007 = vpop.permute.xlu0 %1006
  %1010 = vset.pattern.permute.xlu0 0
  %1011 = vperm.xlu0 %1010, %v315
  %v1012 = vpop.permute.xlu0 %1011
  %1015 = vset.pattern.permute.xlu0 0
  %1016 = vperm.xlu0 %1015, %v316
  %v1017 = vpop.permute.xlu0 %1016
  %1020 = vset.pattern.permute.xlu0 0
  %1021 = vperm.xlu0 %1020, %v317
  %v1022 = vpop.permute.xlu0 %1021
  %1025 = vset.pattern.permute.xlu0 0
  %1026 = vperm.xlu0 %1025, %v318
  %v1027 = vpop.permute.xlu0 %1026
  %1030 = vset.pattern.permute.xlu0 0
  %1031 = vperm.xlu0 %1030, %v319
  %v1032 = vpop.permute.xlu0 %1031
  %1035 = vset.pattern.permute.xlu0 0
  %1036 = vperm.xlu0 %1035, %v320
  %v1037 = vpop.permute.xlu0 %1036
  %1040 = vset.pattern.permute.xlu0 0
  %1041 = vperm.xlu0 %1040, %v321
  %v1042 = vpop.permute.xlu0 %1041
  %1045 = vset.pattern.permute.xlu0 0
  %1046 = vperm.xlu0 %1045, %v322
  %v1047 = vpop.permute.xlu0 %1046
  %1050 = vset.pattern.permute.xlu0 0
  %1051 = vperm.xlu0 %1050, %v323
  %v1052 = vpop.permute.xlu0 %1051
  %1055 = vset.pattern.permute.xlu0 0
  %1056 = vperm.xlu0 %1055, %v324
  %v1057 = vpop.permute.xlu0 %1056
  %1060 = vset.pattern.permute.xlu0 0
  %1061 = vperm.xlu0 %1060, %v325
  %v1062 = vpop.permute.xlu0 %1061
  %1065 = vset.pattern.permute.xlu0 0
  %1066 = vperm.xlu0 %1065, %v326
  %v1067 = vpop.permute.xlu0 %1066
  %1070 = vset.pattern.permute.xlu0 0
  %1071 = vperm.xlu0 %1070, %v327
  %v1072 = vpop.permute.xlu0 %1071
  %1075 = vset.pattern.permute.xlu0 0
  %1076 = vperm.xlu0 %1075, %v328
  %v1077 = vpop.permute.xlu0 %1076
  %1080 = vset.pattern.permute.xlu0 0
  %1081 = vperm.xlu0 %1080, %v329
  %v1082 = vpop.permute.xlu0 %1081
  %1085 = vset.pattern.permute.xlu0 0
  %1086 = vperm.xlu0 %1085, %v330
  %v1087 = vpop.permute.xlu0 %1086
  %1090 = vset.pattern.permute.xlu0 0
  %1091 = vperm.xlu0 %1090, %v331
  %v1092 = vpop.permute.xlu0 %1091
  %1095 = vset.pattern.permute.xlu0 0
  %1096 = vperm.xlu0 %1095, %v332
  %v1097 = vpop.permute.xlu0 %1096
  %1100 = vset.pattern.permute.xlu0 0
  %1101 = vperm.xlu0 %1100, %v333
  %v1102 = vpop.permute.xlu0 %1101
  %1105 = vset.pattern.permute.xlu0 0
  %1106 = vperm.xlu0 %1105, %v334
  %v1107 = vpop.permute.xlu0 %1106
  %1110 = vset.pattern.permute.xlu0 0
  %1111 = vperm.xlu0 %1110, %v335
  %v1112 = vpop.permute.xlu0 %1111
  %1115 = vset.pattern.permute.xlu0 0
  %1116 = vperm.xlu0 %1115, %v336
  %v1117 = vpop.permute.xlu0 %1116
  %1120 = vset.pattern.permute.xlu0 0
  %1121 = vperm.xlu0 %1120, %v337
  %v1122 = vpop.permute.xlu0 %1121
  %1125 = vset.pattern.permute.xlu0 0
  %1126 = vperm.xlu0 %1125, %v338
  %v1127 = vpop.permute.xlu0 %1126
  %1130 = vset.pattern.permute.xlu0 0
  %1131 = vperm.xlu0 %1130, %v339
  %v1132 = vpop.permute.xlu0 %1131
  %1135 = vset.pattern.permute.xlu0 0
  %1136 = vperm.xlu0 %1135, %v340
  %v1137 = vpop.permute.xlu0 %1136
  %1140 = vset.pattern.permute.xlu0 0
  %1141 = vperm.xlu0 %1140, %v341
  %v1142 = vpop.permute.xlu0 %1141
  %1145 = vset.pattern.permute.xlu0 0
  %1146 = vperm.xlu0 %1145, %v342
  %v1147 = vpop.permute.xlu0 %1146
  %1150 = vset.pattern.permute.xlu0 0
  %1151 = vperm.xlu0 %1150, %v343
  %v1152 = vpop.permute.xlu0 %1151
  %1155 = vset.pattern.permute.xlu0 0
  %1156 = vperm.xlu0 %1155, %v344
  %v1157 = vpop.permute.xlu0 %1156
  %1160 = vset.pattern.permute.xlu0 0
  %1161 = vperm.xlu0 %1160, %v345
  %v1162 = vpop.permute.xlu0 %1161
  %1165 = vset.pattern.permute.xlu0 0
  %1166 = vperm.xlu0 %1165, %v346
  %v1167 = vpop.permute.xlu0 %1166
  %1170 = vset.pattern.permute.xlu0 0
  %1171 = vperm.xlu0 %1170, %v347
  %v1172 = vpop.permute.xlu0 %1171
  %1175 = vset.pattern.permute.xlu0 0
  %1176 = vperm.xlu0 %1175, %v348
  %v1177 = vpop.permute.xlu0 %1176
  %1180 = vset.pattern.permute.xlu0 0
  %1181 = vperm.xlu0 %1180, %v349
  %v1182 = vpop.permute.xlu0 %1181
  %1185 = vset.pattern.permute.xlu0 0
  %1186 = vperm.xlu0 %1185, %v350
  %v1187 = vpop.permute.xlu0 %1186
  %1190 = vset.pattern.permute.xlu0 0
  %1191 = vperm.xlu0 %1190, %v351
  %v1192 = vpop.permute.xlu0 %1191
  %1195 = vset.pattern.permute.xlu0 0
  %1196 = vperm.xlu0 %1195, %v352
  %v1197 = vpop.permute.xlu0 %1196
  %1200 = vset.pattern.permute.xlu0 0
  %1201 = vperm.xlu0 %1200, %v353
  %v1202 = vpop.permute.xlu0 %1201
  %1205 = vset.pattern.permute.xlu0 0
  %1206 = vperm.xlu0 %1205, %v354
  %v1207 = vpop.permute.xlu0 %1206
  %1210 = vset.pattern.permute.xlu0 0
  %1211 = vperm.xlu0 %1210, %v355
  %v1212 = vpop.permute.xlu0 %1211
  %1215 = vset.pattern.permute.xlu0 0
  %1216 = vperm.xlu0 %1215, %v356
  %v1217 = vpop.permute.xlu0 %1216
  %1220 = vset.pattern.permute.xlu0 0
  %1221 = vperm.xlu0 %1220, %v357
  %v1222 = vpop.permute.xlu0 %1221
  %1225 = vset.pattern.permute.xlu0 0
  %1226 = vperm.xlu0 %1225, %v358
  %v1227 = vpop.permute.xlu0 %1226
  %v1229 = vmul.f32 %v11, %v362
  %v1230 = vmul.f32 %v12, %v367
  %v1231 = vmul.f32 %v13, %v372
  %v1232 = vmul.f32 %v14, %v377
  %v1233 = vmul.f32 %v15, %v382
  %v1234 = vmul.f32 %v16, %v387
  %v1235 = vmul.f32 %v17, %v392
  %v1236 = vmul.f32 %v18, %v397
  %v1237 = vmul.f32 %v19, %v402
  %v1238 = vmul.f32 %v20, %v407
  %v1239 = vmul.f32 %v21, %v412
  %v1240 = vmul.f32 %v22, %v417
  %v1241 = vmul.f32 %v23, %v422
  %v1242 = vmul.f32 %v24, %v427
  %v1243 = vmul.f32 %v25, %v432
  %v1244 = vmul.f32 %v26, %v437
  %v1245 = vmul.f32 %v27, %v442
  %v1246 = vmul.f32 %v28, %v447
  %v1247 = vmul.f32 %v29, %v452
  %v1248 = vmul.f32 %v30, %v457
  %v1249 = vmul.f32 %v31, %v462
  %v1250 = vmul.f32 %v32, %v467
  %v1251 = vmul.f32 %v33, %v472
  %v1252 = vmul.f32 %v34, %v477
  %v1253 = vmul.f32 %v35, %v482
  %v1254 = vmul.f32 %v36, %v487
  %v1255 = vmul.f32 %v37, %v492
  %v1256 = vmul.f32 %v38, %v497
  %v1257 = vmul.f32 %v39, %v502
  %v1258 = vmul.f32 %v40, %v507
  %v1259 = vmul.f32 %v41, %v512
  %v1260 = vmul.f32 %v42, %v517
  %v1261 = vmul.f32 %v43, %v522
  %v1262 = vmul.f32 %v44, %v527
  %v1263 = vmul.f32 %v45, %v532
  %v1264 = vmul.f32 %v46, %v537
  %v1265 = vmul.f32 %v47, %v542
  %v1266 = vmul.f32 %v48, %v547
  %v1267 = vmul.f32 %v49, %v552
  %v1268 = vmul.f32 %v50, %v557
  %v1269 = vmul.f32 %v51, %v562
  %v1270 = vmul.f32 %v52, %v567
  %v1271 = vmul.f32 %v53, %v572
  %v1272 = vmul.f32 %v54, %v577
  %v1273 = vmul.f32 %v55, %v582
  %v1274 = vmul.f32 %v56, %v587
  %v1275 = vmul.f32 %v57, %v592
  %v1276 = vmul.f32 %v58, %v597
  %v1277 = vmul.f32 %v59, %v602
  %v1278 = vmul.f32 %v60, %v607
  %v1279 = vmul.f32 %v61, %v612
  %v1280 = vmul.f32 %v62, %v617
  %v1281 = vmul.f32 %v63, %v622
  %v1282 = vmul.f32 %v64, %v627
  %v1283 = vmul.f32 %v65, %v632
  %v1284 = vmul.f32 %v66, %v637
  %v1285 = vmul.f32 %v67, %v642
  %v1286 = vmul.f32 %v68, %v647
  %v1287 = vmul.f32 %v69, %v652
  %v1288 = vmul.f32 %v70, %v657
  %v1289 = vmul.f32 %v71, %v662
  %v1290 = vmul.f32 %v72, %v667
  %v1291 = vmul.f32 %v73, %v672
  %v1292 = vmul.f32 %v74, %v677
  %v1293 = vmul.f32 %v75, %v682
  %v1294 = vmul.f32 %v76, %v687
  %v1295 = vmul.f32 %v77, %v692
  %v1296 = vmul.f32 %v78, %v697
  %v1297 = vmul.f32 %v79, %v702
  %v1298 = vmul.f32 %v80, %v707
  %v1299 = vmul.f32 %v81, %v712
  %v1300 = vmul.f32 %v82, %v717
  %v1301 = vmul.f32 %v83, %v722
  %v1302 = vmul.f32 %v84, %v727
  %v1303 = vmul.f32 %v85, %v732
  %v1304 = vmul.f32 %v86, %v737
  %v1305 = vmul.f32 %v87, %v742
  %v1306 = vmul.f32 %v88, %v747
  %v1307 = vmul.f32 %v89, %v752
  %v1308 = vmul.f32 %v90, %v757
  %v1309 = vmul.f32 %v91, %v762
  %v1310 = vmul.f32 %v92, %v767
  %v1311 = vmul.f32 %v93, %v772
  %v1312 = vmul.f32 %v94, %v777
  %v1313 = vmul.f32 %v95, %v782
  %v1314 = vmul.f32 %v96, %v787
  %v1315 = vmul.f32 %v97, %v792
  %v1316 = vmul.f32 %v98, %v797
  %v1317 = vmul.f32 %v99, %v802
  %v1318 = vmul.f32 %v100, %v807
  %v1319 = vmul.f32 %v101, %v812
  %v1320 = vmul.f32 %v102, %v817
  %v1321 = vmul.f32 %v103, %v822
  %v1322 = vmul.f32 %v104, %v827
  %v1323 = vmul.f32 %v105, %v832
  %v1324 = vmul.f32 %v106, %v837
  %v1325 = vmul.f32 %v107, %v842
  %v1326 = vmul.f32 %v108, %v847
  %v1327 = vmul.f32 %v109, %v852
  %v1328 = vmul.f32 %v110, %v857
  %v1329 = vmul.f32 %v111, %v862
  %v1330 = vmul.f32 %v112, %v867
  %v1331 = vmul.f32 %v113, %v872
  %v1332 = vmul.f32 %v114, %v877
  %v1333 = vmul.f32 %v115, %v882
  %v1334 = vmul.f32 %v116, %v887
  %v1335 = vmul.f32 %v117, %v892
  %v1336 = vmul.f32 %v118, %v897
  %v1337 = vmul.f32 %v119, %v902
  %v1338 = vmul.f32 %v120, %v907
  %v1339 = vmul.f32 %v121, %v912
  %v1340 = vmul.f32 %v122, %v917
  %v1341 = vmul.f32 %v123, %v922
  %v1342 = vmul.f32 %v124, %v927
  %v1343 = vmul.f32 %v125, %v932
  %v1344 = vmul.f32 %v126, %v937
  %v1345 = vmul.f32 %v127, %v942
  %v1346 = vmul.f32 %v128, %v947
  %v1347 = vmul.f32 %v129, %v952
  %v1348 = vmul.f32 %v130, %v957
  %v1349 = vmul.f32 %v131, %v962
  %v1350 = vmul.f32 %v132, %v967
  %v1351 = vmul.f32 %v133, %v972
  %v1352 = vmul.f32 %v134, %v977
  %v1353 = vmul.f32 %v135, %v982
  %v1354 = vmul.f32 %v136, %v987
  %v1355 = vmul.f32 %v137, %v992
  %v1356 = vmul.f32 %v138, %v997
  %v1357 = vmul.f32 %v139, %v1002
  %v1358 = vmul.f32 %v140, %v1007
  %v1359 = vmul.f32 %v141, %v1012
  %v1360 = vmul.f32 %v142, %v1017
  %v1361 = vmul.f32 %v143, %v1022
  %v1362 = vmul.f32 %v144, %v1027
  %v1363 = vmul.f32 %v145, %v1032
  %v1364 = vmul.f32 %v146, %v1037
  %v1365 = vmul.f32 %v147, %v1042
  %v1366 = vmul.f32 %v148, %v1047
  %v1367 = vmul.f32 %v149, %v1052
  %v1368 = vmul.f32 %v150, %v1057
  %v1369 = vmul.f32 %v151, %v1062
  %v1370 = vmul.f32 %v152, %v1067
  %v1371 = vmul.f32 %v153, %v1072
  %v1372 = vmul.f32 %v154, %v1077
  %v1373 = vmul.f32 %v155, %v1082
  %v1374 = vmul.f32 %v156, %v1087
  %v1375 = vmul.f32 %v157, %v1092
  %v1376 = vmul.f32 %v158, %v1097
  %v1377 = vmul.f32 %v159, %v1102
  %v1378 = vmul.f32 %v160, %v1107
  %v1379 = vmul.f32 %v161, %v1112
  %v1380 = vmul.f32 %v162, %v1117
  %v1381 = vmul.f32 %v163, %v1122
  %v1382 = vmul.f32 %v164, %v1127
  %v1383 = vmul.f32 %v165, %v1132
  %v1384 = vmul.f32 %v166, %v1137
  %v1385 = vmul.f32 %v167, %v1142
  %v1386 = vmul.f32 %v168, %v1147
  %v1387 = vmul.f32 %v169, %v1152
  %v1388 = vmul.f32 %v170, %v1157
  %v1389 = vmul.f32 %v171, %v1162
  %v1390 = vmul.f32 %v172, %v1167
  %v1391 = vmul.f32 %v173, %v1172
  %v1392 = vmul.f32 %v174, %v1177
  %v1393 = vmul.f32 %v175, %v1182
  %v1394 = vmul.f32 %v176, %v1187
  %v1395 = vmul.f32 %v177, %v1192
  %v1396 = vmul.f32 %v178, %v1197
  %v1397 = vmul.f32 %v179, %v1202
  %v1398 = vmul.f32 %v180, %v1207
  %v1399 = vmul.f32 %v181, %v1212
  %v1400 = vmul.f32 %v182, %v1217
  %v1401 = vmul.f32 %v183, %v1222
  %v1402 = vmul.f32 %v184, %v1227
  %vm1403 = vcmask 400384
  %1404 = vst.msk [vmem:[%s2] sm:$0xff] %vm1403, %v1229
  %1405 = vst.msk [vmem:[%s2 + $0x8] sm:$0xff] %vm1403, %v1230
  %1406 = vst.msk [vmem:[%s2 + $0x10] sm:$0xff] %vm1403, %v1231
  %1407 = vst.msk [vmem:[%s2 + $0x18] sm:$0xff] %vm1403, %v1232
  %1408 = vst.msk [vmem:[%s2 + $0x20] sm:$0xff] %vm1403, %v1233
  %1409 = vst.msk [vmem:[%s2 + $0x28] sm:$0xff] %vm1403, %v1234
  %1410 = vst.msk [vmem:[%s2 + $0x30] sm:$0xff] %vm1403, %v1235
  %1411 = vst.msk [vmem:[%s2 + $0x38] sm:$0xff] %vm1403, %v1236
  %1412 = vst.msk [vmem:[%s2 + $0x40] sm:$0xff] %vm1403, %v1237
  %1413 = vst.msk [vmem:[%s2 + $0x48] sm:$0xff] %vm1403, %v1238
  %1414 = vst.msk [vmem:[%s2 + $0x50] sm:$0xff] %vm1403, %v1239
  %1415 = vst.msk [vmem:[%s2 + $0x58] sm:$0xff] %vm1403, %v1240
  %1416 = vst.msk [vmem:[%s2 + $0x60] sm:$0xff] %vm1403, %v1241
  %1417 = vst.msk [vmem:[%s2 + $0x68] sm:$0xff] %vm1403, %v1242
  %1418 = vst.msk [vmem:[%s2 + $0x70] sm:$0xff] %vm1403, %v1243
  %1419 = vst.msk [vmem:[%s2 + $0x78] sm:$0xff] %vm1403, %v1244
  %1420 = vst.msk [vmem:[%s2 + $0x80] sm:$0xff] %vm1403, %v1245
  %1421 = vst.msk [vmem:[%s2 + $0x88] sm:$0xff] %vm1403, %v1246
  %1422 = vst.msk [vmem:[%s2 + $0x90] sm:$0xff] %vm1403, %v1247
  %1423 = vst.msk [vmem:[%s2 + $0x98] sm:$0xff] %vm1403, %v1248
  %1424 = vst.msk [vmem:[%s2 + $0xa0] sm:$0xff] %vm1403, %v1249
  %1425 = vst.msk [vmem:[%s2 + $0xa8] sm:$0xff] %vm1403, %v1250
  %1426 = vst.msk [vmem:[%s2 + $0xb0] sm:$0xff] %vm1403, %v1251
  %1427 = vst.msk [vmem:[%s2 + $0xb8] sm:$0xff] %vm1403, %v1252
  %1428 = vst.msk [vmem:[%s2 + $0xc0] sm:$0xff] %vm1403, %v1253
  %1429 = vst.msk [vmem:[%s2 + $0xc8] sm:$0xff] %vm1403, %v1254
  %1430 = vst.msk [vmem:[%s2 + $0xd0] sm:$0xff] %vm1403, %v1255
  %1431 = vst.msk [vmem:[%s2 + $0xd8] sm:$0xff] %vm1403, %v1256
  %1432 = vst.msk [vmem:[%s2 + $0xe0] sm:$0xff] %vm1403, %v1257
  %1433 = vst.msk [vmem:[%s2 + $0xe8] sm:$0xff] %vm1403, %v1258
  %1434 = vst.msk [vmem:[%s2 + $0xf0] sm:$0xff] %vm1403, %v1259
  %1435 = vst.msk [vmem:[%s2 + $0xf8] sm:$0xff] %vm1403, %v1260
  %1436 = vst.msk [vmem:[%s2 + $0x100] sm:$0xff] %vm1403, %v1261
  %1437 = vst.msk [vmem:[%s2 + $0x108] sm:$0xff] %vm1403, %v1262
  %1438 = vst.msk [vmem:[%s2 + $0x110] sm:$0xff] %vm1403, %v1263
  %1439 = vst.msk [vmem:[%s2 + $0x118] sm:$0xff] %vm1403, %v1264
  %1440 = vst.msk [vmem:[%s2 + $0x120] sm:$0xff] %vm1403, %v1265
  %1441 = vst.msk [vmem:[%s2 + $0x128] sm:$0xff] %vm1403, %v1266
  %1442 = vst.msk [vmem:[%s2 + $0x130] sm:$0xff] %vm1403, %v1267
  %1443 = vst.msk [vmem:[%s2 + $0x138] sm:$0xff] %vm1403, %v1268
  %1444 = vst.msk [vmem:[%s2 + $0x140] sm:$0xff] %vm1403, %v1269
  %1445 = vst.msk [vmem:[%s2 + $0x148] sm:$0xff] %vm1403, %v1270
  %1446 = vst.msk [vmem:[%s2 + $0x150] sm:$0xff] %vm1403, %v1271
  %1447 = vst.msk [vmem:[%s2 + $0x158] sm:$0xff] %vm1403, %v1272
  %1448 = vst.msk [vmem:[%s2 + $0x160] sm:$0xff] %vm1403, %v1273
  %1449 = vst.msk [vmem:[%s2 + $0x168] sm:$0xff] %vm1403, %v1274
  %1450 = vst.msk [vmem:[%s2 + $0x170] sm:$0xff] %vm1403, %v1275
  %1451 = vst.msk [vmem:[%s2 + $0x178] sm:$0xff] %vm1403, %v1276
  %1452 = vst.msk [vmem:[%s2 + $0x180] sm:$0xff] %vm1403, %v1277
  %1453 = vst.msk [vmem:[%s2 + $0x188] sm:$0xff] %vm1403, %v1278
  %1454 = vst.msk [vmem:[%s2 + $0x190] sm:$0xff] %vm1403, %v1279
  %1455 = vst.msk [vmem:[%s2 + $0x198] sm:$0xff] %vm1403, %v1280
  %1456 = vst.msk [vmem:[%s2 + $0x1a0] sm:$0xff] %vm1403, %v1281
  %1457 = vst.msk [vmem:[%s2 + $0x1a8] sm:$0xff] %vm1403, %v1282
  %1458 = vst.msk [vmem:[%s2 + $0x1b0] sm:$0xff] %vm1403, %v1283
  %1459 = vst.msk [vmem:[%s2 + $0x1b8] sm:$0xff] %vm1403, %v1284
  %1460 = vst.msk [vmem:[%s2 + $0x1c0] sm:$0xff] %vm1403, %v1285
  %1461 = vst.msk [vmem:[%s2 + $0x1c8] sm:$0xff] %vm1403, %v1286
  %1462 = vst.msk [vmem:[%s2 + $0x1d0] sm:$0xff] %vm1403, %v1287
  %1463 = vst.msk [vmem:[%s2 + $0x1d8] sm:$0xff] %vm1403, %v1288
  %1464 = vst.msk [vmem:[%s2 + $0x1e0] sm:$0xff] %vm1403, %v1289
  %1465 = vst.msk [vmem:[%s2 + $0x1e8] sm:$0xff] %vm1403, %v1290
  %1466 = vst.msk [vmem:[%s2 + $0x1f0] sm:$0xff] %vm1403, %v1291
  %1467 = vst.msk [vmem:[%s2 + $0x1f8] sm:$0xff] %vm1403, %v1292
  %1468 = vst.msk [vmem:[%s2 + $0x200] sm:$0xff] %vm1403, %v1293
  %1469 = vst.msk [vmem:[%s2 + $0x208] sm:$0xff] %vm1403, %v1294
  %1470 = vst.msk [vmem:[%s2 + $0x210] sm:$0xff] %vm1403, %v1295
  %1471 = vst.msk [vmem:[%s2 + $0x218] sm:$0xff] %vm1403, %v1296
  %1472 = vst.msk [vmem:[%s2 + $0x220] sm:$0xff] %vm1403, %v1297
  %1473 = vst.msk [vmem:[%s2 + $0x228] sm:$0xff] %vm1403, %v1298
  %1474 = vst.msk [vmem:[%s2 + $0x230] sm:$0xff] %vm1403, %v1299
  %1475 = vst.msk [vmem:[%s2 + $0x238] sm:$0xff] %vm1403, %v1300
  %1476 = vst.msk [vmem:[%s2 + $0x240] sm:$0xff] %vm1403, %v1301
  %1477 = vst.msk [vmem:[%s2 + $0x248] sm:$0xff] %vm1403, %v1302
  %1478 = vst.msk [vmem:[%s2 + $0x250] sm:$0xff] %vm1403, %v1303
  %1479 = vst.msk [vmem:[%s2 + $0x258] sm:$0xff] %vm1403, %v1304
  %1480 = vst.msk [vmem:[%s2 + $0x260] sm:$0xff] %vm1403, %v1305
  %1481 = vst.msk [vmem:[%s2 + $0x268] sm:$0xff] %vm1403, %v1306
  %1482 = vst.msk [vmem:[%s2 + $0x270] sm:$0xff] %vm1403, %v1307
  %1483 = vst.msk [vmem:[%s2 + $0x278] sm:$0xff] %vm1403, %v1308
  %1484 = vst.msk [vmem:[%s2 + $0x280] sm:$0xff] %vm1403, %v1309
  %1485 = vst.msk [vmem:[%s2 + $0x288] sm:$0xff] %vm1403, %v1310
  %1486 = vst.msk [vmem:[%s2 + $0x290] sm:$0xff] %vm1403, %v1311
  %1487 = vst.msk [vmem:[%s2 + $0x298] sm:$0xff] %vm1403, %v1312
  %1488 = vst.msk [vmem:[%s2 + $0x2a0] sm:$0xff] %vm1403, %v1313
  %1489 = vst.msk [vmem:[%s2 + $0x2a8] sm:$0xff] %vm1403, %v1314
  %1490 = vst.msk [vmem:[%s2 + $0x2b0] sm:$0xff] %vm1403, %v1315
  %1491 = vst.msk [vmem:[%s2 + $0x2b8] sm:$0xff] %vm1403, %v1316
  %1492 = vst.msk [vmem:[%s2 + $0x2c0] sm:$0xff] %vm1403, %v1317
  %1493 = vst.msk [vmem:[%s2 + $0x2c8] sm:$0xff] %vm1403, %v1318
  %1494 = vst.msk [vmem:[%s2 + $0x2d0] sm:$0xff] %vm1403, %v1319
  %1495 = vst.msk [vmem:[%s2 + $0x2d8] sm:$0xff] %vm1403, %v1320
  %1496 = vst.msk [vmem:[%s2 + $0x2e0] sm:$0xff] %vm1403, %v1321
  %1497 = vst.msk [vmem:[%s2 + $0x2e8] sm:$0xff] %vm1403, %v1322
  %1498 = vst.msk [vmem:[%s2 + $0x2f0] sm:$0xff] %vm1403, %v1323
  %1499 = vst.msk [vmem:[%s2 + $0x2f8] sm:$0xff] %vm1403, %v1324
  %1500 = vst.msk [vmem:[%s2 + $0x300] sm:$0xff] %vm1403, %v1325
  %1501 = vst.msk [vmem:[%s2 + $0x308] sm:$0xff] %vm1403, %v1326
  %1502 = vst.msk [vmem:[%s2 + $0x310] sm:$0xff] %vm1403, %v1327
  %1503 = vst.msk [vmem:[%s2 + $0x318] sm:$0xff] %vm1403, %v1328
  %1504 = vst.msk [vmem:[%s2 + $0x320] sm:$0xff] %vm1403, %v1329
  %1505 = vst.msk [vmem:[%s2 + $0x328] sm:$0xff] %vm1403, %v1330
  %1506 = vst.msk [vmem:[%s2 + $0x330] sm:$0xff] %vm1403, %v1331
  %1507 = vst.msk [vmem:[%s2 + $0x338] sm:$0xff] %vm1403, %v1332
  %1508 = vst.msk [vmem:[%s2 + $0x340] sm:$0xff] %vm1403, %v1333
  %1509 = vst.msk [vmem:[%s2 + $0x348] sm:$0xff] %vm1403, %v1334
  %1510 = vst.msk [vmem:[%s2 + $0x350] sm:$0xff] %vm1403, %v1335
  %1511 = vst.msk [vmem:[%s2 + $0x358] sm:$0xff] %vm1403, %v1336
  %1512 = vst.msk [vmem:[%s2 + $0x360] sm:$0xff] %vm1403, %v1337
  %1513 = vst.msk [vmem:[%s2 + $0x368] sm:$0xff] %vm1403, %v1338
  %1514 = vst.msk [vmem:[%s2 + $0x370] sm:$0xff] %vm1403, %v1339
  %1515 = vst.msk [vmem:[%s2 + $0x378] sm:$0xff] %vm1403, %v1340
  %1516 = vst.msk [vmem:[%s2 + $0x380] sm:$0xff] %vm1403, %v1341
  %1517 = vst.msk [vmem:[%s2 + $0x388] sm:$0xff] %vm1403, %v1342
  %1518 = vst.msk [vmem:[%s2 + $0x390] sm:$0xff] %vm1403, %v1343
  %1519 = vst.msk [vmem:[%s2 + $0x398] sm:$0xff] %vm1403, %v1344
  %1520 = vst.msk [vmem:[%s2 + $0x3a0] sm:$0xff] %vm1403, %v1345
  %1521 = vst.msk [vmem:[%s2 + $0x3a8] sm:$0xff] %vm1403, %v1346
  %1522 = vst.msk [vmem:[%s2 + $0x3b0] sm:$0xff] %vm1403, %v1347
  %1523 = vst.msk [vmem:[%s2 + $0x3b8] sm:$0xff] %vm1403, %v1348
  %1524 = vst.msk [vmem:[%s2 + $0x3c0] sm:$0xff] %vm1403, %v1349
  %1525 = vst.msk [vmem:[%s2 + $0x3c8] sm:$0xff] %vm1403, %v1350
  %1526 = vst.msk [vmem:[%s2 + $0x3d0] sm:$0xff] %vm1403, %v1351
  %1527 = vst.msk [vmem:[%s2 + $0x3d8] sm:$0xff] %vm1403, %v1352
  %1528 = vst.msk [vmem:[%s2 + $0x3e0] sm:$0xff] %vm1403, %v1353
  %1529 = vst.msk [vmem:[%s2 + $0x3e8] sm:$0xff] %vm1403, %v1354
  %1530 = vst.msk [vmem:[%s2 + $0x3f0] sm:$0xff] %vm1403, %v1355
  %1531 = vst.msk [vmem:[%s2 + $0x3f8] sm:$0xff] %vm1403, %v1356
  %1532 = vst.msk [vmem:[%s2 + $0x400] sm:$0xff] %vm1403, %v1357
  %1533 = vst.msk [vmem:[%s2 + $0x408] sm:$0xff] %vm1403, %v1358
  %1534 = vst.msk [vmem:[%s2 + $0x410] sm:$0xff] %vm1403, %v1359
  %1535 = vst.msk [vmem:[%s2 + $0x418] sm:$0xff] %vm1403, %v1360
  %1536 = vst.msk [vmem:[%s2 + $0x420] sm:$0xff] %vm1403, %v1361
  %1537 = vst.msk [vmem:[%s2 + $0x428] sm:$0xff] %vm1403, %v1362
  %1538 = vst.msk [vmem:[%s2 + $0x430] sm:$0xff] %vm1403, %v1363
  %1539 = vst.msk [vmem:[%s2 + $0x438] sm:$0xff] %vm1403, %v1364
  %1540 = vst.msk [vmem:[%s2 + $0x440] sm:$0xff] %vm1403, %v1365
  %1541 = vst.msk [vmem:[%s2 + $0x448] sm:$0xff] %vm1403, %v1366
  %1542 = vst.msk [vmem:[%s2 + $0x450] sm:$0xff] %vm1403, %v1367
  %1543 = vst.msk [vmem:[%s2 + $0x458] sm:$0xff] %vm1403, %v1368
  %1544 = vst.msk [vmem:[%s2 + $0x460] sm:$0xff] %vm1403, %v1369
  %1545 = vst.msk [vmem:[%s2 + $0x468] sm:$0xff] %vm1403, %v1370
  %1546 = vst.msk [vmem:[%s2 + $0x470] sm:$0xff] %vm1403, %v1371
  %1547 = vst.msk [vmem:[%s2 + $0x478] sm:$0xff] %vm1403, %v1372
  %1548 = vst.msk [vmem:[%s2 + $0x480] sm:$0xff] %vm1403, %v1373
  %1549 = vst.msk [vmem:[%s2 + $0x488] sm:$0xff] %vm1403, %v1374
  %1550 = vst.msk [vmem:[%s2 + $0x490] sm:$0xff] %vm1403, %v1375
  %1551 = vst.msk [vmem:[%s2 + $0x498] sm:$0xff] %vm1403, %v1376
  %1552 = vst.msk [vmem:[%s2 + $0x4a0] sm:$0xff] %vm1403, %v1377
  %1553 = vst.msk [vmem:[%s2 + $0x4a8] sm:$0xff] %vm1403, %v1378
  %1554 = vst.msk [vmem:[%s2 + $0x4b0] sm:$0xff] %vm1403, %v1379
  %1555 = vst.msk [vmem:[%s2 + $0x4b8] sm:$0xff] %vm1403, %v1380
  %1556 = vst.msk [vmem:[%s2 + $0x4c0] sm:$0xff] %vm1403, %v1381
  %1557 = vst.msk [vmem:[%s2 + $0x4c8] sm:$0xff] %vm1403, %v1382
  %1558 = vst.msk [vmem:[%s2 + $0x4d0] sm:$0xff] %vm1403, %v1383
  %1559 = vst.msk [vmem:[%s2 + $0x4d8] sm:$0xff] %vm1403, %v1384
  %1560 = vst.msk [vmem:[%s2 + $0x4e0] sm:$0xff] %vm1403, %v1385
  %1561 = vst.msk [vmem:[%s2 + $0x4e8] sm:$0xff] %vm1403, %v1386
  %1562 = vst.msk [vmem:[%s2 + $0x4f0] sm:$0xff] %vm1403, %v1387
  %1563 = vst.msk [vmem:[%s2 + $0x4f8] sm:$0xff] %vm1403, %v1388
  %1564 = vst.msk [vmem:[%s2 + $0x500] sm:$0xff] %vm1403, %v1389
  %1565 = vst.msk [vmem:[%s2 + $0x508] sm:$0xff] %vm1403, %v1390
  %1566 = vst.msk [vmem:[%s2 + $0x510] sm:$0xff] %vm1403, %v1391
  %1567 = vst.msk [vmem:[%s2 + $0x518] sm:$0xff] %vm1403, %v1392
  %1568 = vst.msk [vmem:[%s2 + $0x520] sm:$0xff] %vm1403, %v1393
  %1569 = vst.msk [vmem:[%s2 + $0x528] sm:$0xff] %vm1403, %v1394
  %1570 = vst.msk [vmem:[%s2 + $0x530] sm:$0xff] %vm1403, %v1395
  %1571 = vst.msk [vmem:[%s2 + $0x538] sm:$0xff] %vm1403, %v1396
  %1572 = vst.msk [vmem:[%s2 + $0x540] sm:$0xff] %vm1403, %v1397
  %1573 = vst.msk [vmem:[%s2 + $0x548] sm:$0xff] %vm1403, %v1398
  %1574 = vst.msk [vmem:[%s2 + $0x550] sm:$0xff] %vm1403, %v1399
  %1575 = vst.msk [vmem:[%s2 + $0x558] sm:$0xff] %vm1403, %v1400
  %1576 = vst.msk [vmem:[%s2 + $0x560] sm:$0xff] %vm1403, %v1401
  %1577 = vst.msk [vmem:[%s2 + $0x568] sm:$0xff] %vm1403, %v1402
  // Predicated region
  $region10: #{channelwise_mul.1} parent=0 // pred_check
    _
  $region11: #{channelwise_mul.1} parent=0 // pred_check_branch
    %1579 = sbr.rel (0) target = $region13
  $region12: #{channelwise_mul.1} parent=0 // pred_region
    _
  $region13: #{channelwise_mul.1} parent=0 // pred_fallthru
    _
  // Predicated region
  $region14: #{channelwise_mul.1} parent=0 // pred_check
    _
  $region15: #{channelwise_mul.1} parent=0 // pred_check_branch
    %1581 = sbr.rel (0) target = $region17
  $region16: #{channelwise_mul.1} parent=0 // pred_region
    _
  $region17: #{channelwise_mul.1} parent=0 // pred_fallthru
    _

</llo_original>
